<compile_context>
chip_gen: v7x
topology: tpu7x:2x2x1
jax: 0.10.0
libtpu: 0.0.40
codegen_flags: <defaults>
</compile_context>

<pallas_src>
import jax
import jax.numpy as jnp
from jax.experimental import pallas as pl
from jax.experimental.pallas import tpu as pltpu


def _kl_kernel(temp_ref, nrows_ref, pred_ref, tgt_ref, out_ref):
    # temp_ref : (1,) f32 SMEM  -- precomputed clamp(exp(param), 1.0, 100.0)
    # nrows_ref: (1,) i32 SMEM  -- true batch size N (row masking of padded tiles)
    # pred_ref : (tb, C) VMEM logits tile
    # tgt_ref  : (tb, C) VMEM target-probability tile
    # out_ref  : (1, 8, C) VMEM per-chunk partial-sum slab, resident across the inner axis
    chunk = pl.program_id(0)
    t = pl.program_id(1)

    @pl.when(t == 0)
    def _():
        out_ref[...] = jnp.zeros_like(out_ref)

    tb, C = pred_ref.shape

    # Logical (unclamped) first row of this tile.  For padded chunks the index_map clamps
    # the DMA to the last real tile; those grid steps contribute nothing, so skip the
    # exp/log/XLU work entirely (the DMA itself cannot be avoided).
    row0 = (chunk * pl.num_programs(1) + t) * tb

    @pl.when(row0 < nrows_ref[0])
    def _():
        row_ids = row0 + jax.lax.broadcasted_iota(jnp.int32, (tb, 1), 0)
        row_mask = row_ids < nrows_ref[0]

        temp = temp_ref[0]

        # log_softmax over the class axis (dim=1 in the PyTorch module)
        x = pred_ref[...].astype(jnp.float32) * temp
        m = jnp.max(x, axis=-1, keepdims=True)
        lse = jnp.log(jnp.sum(jnp.exp(x - m), axis=-1, keepdims=True)) + m
        logp = x - lse

        # KLDivLoss pointwise: target * (log(target) - logp); 0 where target <= 0 or padded
        # row.  Masking is done with elementwise selects BEFORE any summation so garbage /
        # NaN from padded HBM rows never propagates.
        tgt = tgt_ref[...].astype(jnp.float32)
        valid = jnp.logical_and(tgt > 0.0, row_mask)
        safe_t = jnp.where(valid, tgt, 1.0)
        kl = jnp.where(valid, tgt * (jnp.log(safe_t) - logp), 0.0)

        # Fold the tb rows into an (8, C) slab with cheap elementwise adds (no per-step
        # cross-lane reduce); lanes/sublanes are collapsed once in the JAX wrapper.
        partial = jnp.sum(kl.reshape(tb // 8, 8, C), axis=0)
        out_ref[...] += partial[None]


def _round_up(x, m):
    return ((x + m - 1) // m) * m


def _physical_vmem_bytes():
    """Best-effort physical VMEM capacity; conservative (v7x = 64 MiB) fallback."""
    try:
        info = pltpu.get_tpu_info()
        v = getattr(info, "vmem_capacity_bytes", None)
        if v:
            return int(v)
    except Exception:
        pass
    return 64 * 1024 * 1024


def _num_tensorcores():
    """Best-effort TensorCore count of the local chip (2 on v7x, else 1)."""
    try:
        info = pltpu.get_tpu_info()
        for attr in ("num_cores", "core_count", "num_tensorcores"):
            v = getattr(info, attr, None)
            if isinstance(v, int) and v > 0:
                return v
    except Exception:
        pass
    try:
        v = getattr(jax.devices()[0], "num_cores", None)
        if isinstance(v, int) and v > 0:
            return v
    except Exception:
        pass
    return 1


def _estimate_vmem_bytes(tb, C, itemsize_pred, itemsize_tgt):
    data = 2 * tb * C * (itemsize_pred + itemsize_tgt)  # 2 pipeline buffers per input
    interm = 5 * tb * C * 4                             # f32 temporaries (x, exp, logp, tgt, kl)
    out_slab = 2 * 8 * C * 4                            # resident / double-buffered out block
    return data + interm + out_slab


def kl_div_loss(pred, target_prob, temp_param, *, tb=None, n_chunks=None,
                block_byte_target=4 * 1024 * 1024):
    """pred: (N, C) logits; target_prob: (N, C) probabilities; temp_param: () or (1,) raw param."""
    N, C = pred.shape
    itemsize_pred = jnp.dtype(pred.dtype).itemsize
    itemsize_tgt = jnp.dtype(target_prob.dtype).itemsize

    # Sublane multiple from the *strictest* (smallest-itemsize) input dtype.
    sub = {4: 8, 2: 16, 1: 32}.get(min(itemsize_pred, itemsize_tgt), 8)

    # Physical-VMEM-aware budget (~112 MiB on v5e/v6e, ~48 MiB on v7x).
    vmem_cap = max(32 * 1024 * 1024, _physical_vmem_bytes() - 16 * 1024 * 1024)

    # Size the batch tile by bytes: aim for ~block_byte_target per input block so per-step
    # pipeline overhead is amortised; then clamp to N and to the full-usage VMEM budget.
    if tb is None:
        bytes_per_row = C * max(itemsize_pred, itemsize_tgt)
        tb = max(sub, block_byte_target // bytes_per_row)
    tb_eff = max(sub, min(_round_up(tb, sub), _round_up(N, sub)))
    while tb_eff > sub and _estimate_vmem_bytes(tb_eff, C, itemsize_pred, itemsize_tgt) > vmem_cap:
        tb_eff = max(sub, _round_up(tb_eff // 2, sub))
    if _estimate_vmem_bytes(tb_eff, C, itemsize_pred, itemsize_tgt) > vmem_cap:
        # TODO(synk): class-axis blocking with online log-sum-exp for vocab-scale C.
        raise ValueError(
            f"KLDivLoss Pallas kernel: a single ({tb_eff}, {C}) row-slab plus f32 "
            f"intermediates does not fit in VMEM ({vmem_cap} bytes); class-axis blocking "
            f"is not implemented yet.")

    total_tiles = pl.cdiv(N, tb_eff)
    if n_chunks is None:
        n_chunks = _num_tensorcores()
    n_chunks_eff = max(1, min(n_chunks, total_tiles))
    tiles_per_chunk = pl.cdiv(total_tiles, n_chunks_eff)

    # Hoisted temperature: clamp(exp(param), 1, 100) computed once, passed via SMEM.
    temp = jnp.clip(jnp.exp(jnp.asarray(temp_param, jnp.float32)), 1.0, 100.0).reshape((1,))
    nrows = jnp.asarray([N], dtype=jnp.int32)

    def data_map(c, t):
        # Clamp so no fully-out-of-bounds block is DMA'd; duplicated/padded tiles skip all
        # compute in-kernel (pl.when on the logical row id) and contribute nothing.
        return (jnp.minimum(c * tiles_per_chunk + t, total_tiles - 1), 0)

    partials = pl.pallas_call(
        _kl_kernel,
        out_shape=jax.ShapeDtypeStruct((n_chunks_eff, 8, C), jnp.float32),
        grid_spec=pltpu.PrefetchScalarGridSpec(
            num_scalar_prefetch=0,
            grid=(n_chunks_eff, tiles_per_chunk),
            in_specs=[
                pl.BlockSpec(memory_space=pltpu.SMEM),        # clamped temperature
                pl.BlockSpec(memory_space=pltpu.SMEM),        # true N
                pl.BlockSpec((tb_eff, C), data_map),          # pred tile
                pl.BlockSpec((tb_eff, C), data_map),          # target tile
            ],
            out_specs=pl.BlockSpec((1, 8, C), lambda c, t: (c, 0, 0)),
        ),
        compiler_params=pltpu.CompilerParams(
            dimension_semantics=("parallel", "arbitrary"),
            vmem_limit_bytes=int(vmem_cap),
        ),
    )(temp, nrows, pred, target_prob)

    # Final lane/sublane collapse + batchmean divide by the true N.
    return jnp.sum(partials) / jnp.float32(N)


def _reference(pred, target_prob, temp_param):
    temp = jnp.clip(jnp.exp(jnp.asarray(temp_param, jnp.float32)), 1.0, 100.0)
    logp = jax.nn.log_softmax(pred.astype(jnp.float32) * temp, axis=1)
    t = target_prob.astype(jnp.float32)
    kl = jnp.where(t > 0.0, t * (jnp.log(jnp.where(t > 0.0, t, 1.0)) - logp), 0.0)
    return jnp.sum(kl) / pred.shape[0]


if __name__ == "__main__":
    key = jax.random.PRNGKey(0)

    # deterministic parameter init, matching nn.Parameter(torch.tensor(3.9))
    temp_param = jnp.float32(3.9)

    # Case 1: small, tile-aligned shapes (C on the 128-lane axis), auto tile / chunk sizing.
    k1, k2, k3, k4 = jax.random.split(key, 4)
    N1, C1 = 16, 128
    pred1 = jax.random.normal(k1, (N1, C1), dtype=jnp.float32)
    tgt1 = jax.nn.softmax(jax.random.normal(k2, (N1, C1), dtype=jnp.float32), axis=1)

    loss1 = jax.block_until_ready(kl_div_loss(pred1, tgt1, temp_param))
    ref1 = _reference(pred1, tgt1, temp_param)
    if not jnp.allclose(loss1, ref1, rtol=1e-5, atol=1e-5):
        raise AssertionError(f"mismatch (case 1): kernel={loss1} ref={ref1}")

    # Case 2: N not divisible by the tile -> exercises cdiv grid + row masking + padded
    # chunk (clamped index map + pl.when compute skip) on the megacore axis.
    N2, C2 = 40, 128
    pred2 = jax.random.normal(k3, (N2, C2), dtype=jnp.float32)
    tgt2 = jax.nn.softmax(jax.random.normal(k4, (N2, C2), dtype=jnp.float32), axis=1)

    loss2 = jax.block_until_ready(kl_div_loss(pred2, tgt2, temp_param, tb=16, n_chunks=2))
    ref2 = _reference(pred2, tgt2, temp_param)
    if not jnp.allclose(loss2, ref2, rtol=1e-5, atol=1e-5):
        raise AssertionError(f"mismatch (case 2): kernel={loss2} ref={ref2}")

    print("KERNEL_OK")
</pallas_src>

<mosaic_0001>
module attributes {stable_mosaic.version = 11 : i64} {
  func.func @_kl_kernel(%arg0: i32, %arg1: i32, %arg2: memref<1xf32, #tpu.memory_space<smem>>, %arg3: memref<1xi32, #tpu.memory_space<smem>>, %arg4: memref<16x128xf32, #tpu.memory_space<vmem>>, %arg5: memref<16x128xf32, #tpu.memory_space<vmem>>, %arg6: memref<1x8x128xf32, #tpu.memory_space<vmem>>) attributes {dimension_semantics = [#tpu.dimension_semantics<parallel>, #tpu.dimension_semantics<arbitrary>], iteration_bounds = array<i64: 1, 1>, scalar_prefetch = 0 : i64, scratch_operands = 0 : i64, tpu.core_type = #tpu.core_type<tc>, window_params = [{transform_indices = @transform_0, window_bounds = array<i64: 1>}, {transform_indices = @transform_1, window_bounds = array<i64: 1>}, {transform_indices = @transform_2, window_bounds = array<i64: 16, 128>}, {transform_indices = @transform_3, window_bounds = array<i64: 16, 128>}, {transform_indices = @transform_4, window_bounds = array<i64: 1, 8, 128>}]} {
    %c0_i32 = arith.constant 0 : i32
    %0 = arith.cmpi eq, %arg1, %c0_i32 : i32
    %1 = arith.extui %0 : i1 to i32
    %c0_i32_0 = arith.constant 0 : i32
    %2 = arith.cmpi ne, %1, %c0_i32_0 : i32
    scf.if %2 {
      %cst = arith.constant 0.000000e+00 : f32
      %10 = vector.broadcast %cst : f32 to vector<1x8x128xf32>
      %c0_2 = arith.constant 0 : index
      %c0_3 = arith.constant 0 : index
      %c0_4 = arith.constant 0 : index
      %11 = vector.load %arg6[%c0_2, %c0_3, %c0_4] : memref<1x8x128xf32, #tpu.memory_space<vmem>>, vector<1x8x128xf32>
      tpu.vector_store %arg6[%c0_2, %c0_3, %c0_4], %10 {strides = array<i32>} : memref<1x8x128xf32, #tpu.memory_space<vmem>>, vector<1x8x128xf32>,
    } else {
    }
    %c1_i32 = arith.constant 1 : i32
    %3 = arith.muli %arg0, %c1_i32 : i32
    %4 = arith.addi %3, %arg1 : i32
    %c16_i32 = arith.constant 16 : i32
    %5 = arith.muli %4, %c16_i32 : i32
    %c0 = arith.constant 0 : index
    %6 = memref.load %arg3[%c0] : memref<1xi32, #tpu.memory_space<smem>>
    %7 = arith.cmpi slt, %5, %6 : i32
    %8 = arith.extui %7 : i1 to i32
    %c0_i32_1 = arith.constant 0 : i32
    %9 = arith.cmpi ne, %8, %c0_i32_1 : i32
    scf.if %9 {
      %10 = tpu.iota {dimensions = array<i32: 0>} : vector<16x1xi32>
      %11 = vector.broadcast %5 : i32 to vector<16x1xi32>
      %12 = arith.addi %11, %10 : vector<16x1xi32>
      %c0_2 = arith.constant 0 : index
      %13 = memref.load %arg3[%c0_2] : memref<1xi32, #tpu.memory_space<smem>>
      %14 = vector.broadcast %13 : i32 to vector<16x1xi32>
      %15 = arith.cmpi slt, %12, %14 : vector<16x1xi32>
      %c0_3 = arith.constant 0 : index
      %16 = memref.load %arg2[%c0_3] : memref<1xf32, #tpu.memory_space<smem>>
      %c0_4 = arith.constant 0 : index
      %c0_5 = arith.constant 0 : index
      %17 = vector.load %arg4[%c0_4, %c0_5] : memref<16x128xf32, #tpu.memory_space<vmem>>, vector<16x128xf32>
      %18 = vector.broadcast %16 : f32 to vector<16x128xf32>
      %19 = arith.mulf %17, %18 : vector<16x128xf32>
      %cst = arith.constant dense<0xFF800000> : vector<16xf32>
      %20 = vector.multi_reduction <maximumf>, %19, %cst [1] : vector<16x128xf32> to vector<16xf32>
      %21 = vector.shape_cast %20 : vector<16xf32> to vector<16x1xf32>
      %22 = vector.broadcast %21 : vector<16x1xf32> to vector<16x128xf32>
      %23 = arith.subf %19, %22 : vector<16x128xf32>
      %24 = math.exp %23 : vector<16x128xf32>
      %cst_6 = arith.constant dense<0.000000e+00> : vector<16xf32>
      %25 = vector.multi_reduction <add>, %24, %cst_6 [1] : vector<16x128xf32> to vector<16xf32>
      %26 = vector.shape_cast %25 : vector<16xf32> to vector<16x1xf32>
      %27 = math.log %26 : vector<16x1xf32>
      %28 = arith.addf %27, %21 : vector<16x1xf32>
      %29 = vector.broadcast %28 : vector<16x1xf32> to vector<16x128xf32>
      %30 = arith.subf %19, %29 : vector<16x128xf32>
      %c0_7 = arith.constant 0 : index
      %c0_8 = arith.constant 0 : index
      %31 = vector.load %arg5[%c0_7, %c0_8] : memref<16x128xf32, #tpu.memory_space<vmem>>, vector<16x128xf32>
      %cst_9 = arith.constant 0.000000e+00 : f32
      %32 = vector.broadcast %cst_9 : f32 to vector<16x128xf32>
      %33 = arith.cmpf ogt, %31, %32 : vector<16x128xf32>
      %34 = vector.broadcast %15 : vector<16x1xi1> to vector<16x128xi1>
      %35 = arith.andi %33, %34 : vector<16x128xi1>
      %cst_10 = arith.constant 1.000000e+00 : f32
      %36 = vector.broadcast %cst_10 : f32 to vector<16x128xf32>
      %37 = arith.select %35, %31, %36 : vector<16x128xi1>, vector<16x128xf32>
      %38 = math.log %37 : vector<16x128xf32>
      %39 = arith.subf %38, %30 : vector<16x128xf32>
      %40 = arith.mulf %31, %39 : vector<16x128xf32>
      %cst_11 = arith.constant 0.000000e+00 : f32
      %41 = vector.broadcast %cst_11 : f32 to vector<16x128xf32>
      %42 = arith.select %35, %40, %41 : vector<16x128xi1>, vector<16x128xf32>
      %43 = vector.shape_cast %42 : vector<16x128xf32> to vector<2x8x128xf32>
      %cst_12 = arith.constant dense<0.000000e+00> : vector<8x128xf32>
      %44 = vector.multi_reduction <add>, %43, %cst_12 [0] : vector<2x8x128xf32> to vector<8x128xf32>
      %c0_13 = arith.constant 0 : index
      %c0_14 = arith.constant 0 : index
      %c0_15 = arith.constant 0 : index
      %45 = vector.load %arg6[%c0_13, %c0_14, %c0_15] : memref<1x8x128xf32, #tpu.memory_space<vmem>>, vector<1x8x128xf32>
      %46 = vector.shape_cast %44 : vector<8x128xf32> to vector<1x8x128xf32>
      %47 = arith.addf %45, %46 : vector<1x8x128xf32>
      %c0_16 = arith.constant 0 : index
      %c0_17 = arith.constant 0 : index
      %c0_18 = arith.constant 0 : index
      %48 = vector.load %arg6[%c0_16, %c0_17, %c0_18] : memref<1x8x128xf32, #tpu.memory_space<vmem>>, vector<1x8x128xf32>
      tpu.vector_store %arg6[%c0_16, %c0_17, %c0_18], %47 {strides = array<i32>} : memref<1x8x128xf32, #tpu.memory_space<vmem>>, vector<1x8x128xf32>,
    } else {
    }
    return
  }
  func.func @transform_0(%arg0: i32, %arg1: i32) -> i32 {
    %c0_i32 = arith.constant 0 : i32
    %c0_i32_0 = arith.constant 0 : i32
    return %c0_i32 : i32
  }
  func.func @transform_1(%arg0: i32, %arg1: i32) -> i32 {
    %c0_i32 = arith.constant 0 : i32
    %c0_i32_0 = arith.constant 0 : i32
    return %c0_i32 : i32
  }
  func.func @transform_2(%arg0: i32, %arg1: i32) -> (i32, i32) {
    %c1_i32 = arith.constant 1 : i32
    %0 = arith.muli %arg0, %c1_i32 : i32
    %1 = arith.addi %0, %arg1 : i32
    %c0_i32 = arith.constant 0 : i32
    %2 = arith.minsi %1, %c0_i32 : i32
    %c0_i32_0 = arith.constant 0 : i32
    %c0_i32_1 = arith.constant 0 : i32
    return %2, %c0_i32_0 : i32, i32
  }
  func.func @transform_3(%arg0: i32, %arg1: i32) -> (i32, i32) {
    %c1_i32 = arith.constant 1 : i32
    %0 = arith.muli %arg0, %c1_i32 : i32
    %1 = arith.addi %0, %arg1 : i32
    %c0_i32 = arith.constant 0 : i32
    %2 = arith.minsi %1, %c0_i32 : i32
    %c0_i32_0 = arith.constant 0 : i32
    %c0_i32_1 = arith.constant 0 : i32
    return %2, %c0_i32_0 : i32, i32
  }
  func.func @transform_4(%arg0: i32, %arg1: i32) -> (i32, i32, i32) {
    %c0_i32 = arith.constant 0 : i32
    %c0_i32_0 = arith.constant 0 : i32
    %c0_i32_1 = arith.constant 0 : i32
    return %arg0, %c0_i32, %c0_i32_0 : i32, i32, i32
  }
}

</mosaic_0001>

<llo_original>
// kernel: tpu_custom_call.1
$region0: #{tpu_custom_call.1}
  #allocation0 [shape = 'u32[]', space=smem, size = 0x4, offset = 0x4, fixed_abs, tag = 'smem constant byte address 0x4 - core index']
  #allocation1 [shape = 'u32[144,128]{1,0:T(1,128)}', space=vmem, size = 0x12000, scoped, tag = 'internal scratch']
  #allocation2 [shape = 'f32[1]{0:T(128)S(6)}', space=smem, size = 0x200, scoped, tag = 'scoped memory for tpu_custom_call.1']
  #allocation3 [shape = 's32[1]{0:T(128)S(6)}', space=smem, size = 0x200, scoped, tag = 'scoped memory for tpu_custom_call.1']
  %s0 = inlined_call_operand.<no memory space> [shape: f32[1], index: 0, kind: input, shape index: {}]
  %s1 = inlined_call_operand.<no memory space> [shape: s32[1], index: 1, kind: input, shape index: {}]
  %s2 = inlined_call_operand.hbm [shape: f32[16,128], index: 2, kind: input, shape index: {}]
  %s3 = inlined_call_operand.hbm [shape: f32[16,128], index: 3, kind: input, shape index: {}]
  %s4 = inlined_call_operand.hbm [shape: f32[1,8,128], index: 4, kind: output, shape index: {}]
  %s5 = sld [smem:[#allocation0]]
  $region42: #{tpu_custom_call.1} parent=0
    _
  %s7 = ssub.s32 1, %s5
  %s8 = scalar_select 0, %s7, %s5
  %9 = sst [smem:[#allocation2]] %s0
  %10 = sst [smem:[#allocation3]] %s1
  $region1: #{tpu_custom_call.1} parent=0
    #allocation4 [shape = 'u8[8192]{0}', space=vmem, size = 0x2000, scoped, tag = 'input window, operand 2, single buffered']
    #allocation5 [shape = 's32[1]{0}', space=sflag, size = 0x4, scoped, tag = 'scoped memory for tpu_custom_call.1']
    #allocation6 [shape = 's32[1]{0}', space=sflag, size = 0x4, scoped, tag = 'scoped memory for tpu_custom_call.1']
    #allocation7 [shape = 'u8[8192]{0}', space=vmem, size = 0x2000, scoped, tag = 'input window, operand 3, single buffered']
    #allocation8 [shape = 's32[1]{0}', space=sflag, size = 0x4, scoped, tag = 'scoped memory for tpu_custom_call.1']
    #allocation9 [shape = 'u8[4096]{0}', space=vmem, size = 0x1000, scoped, tag = 'output window, operand 0, single buffered']
    %11 = vsyncpa [#allocation5], 0
    %12 = vsyncpa [#allocation8], 0
    %13 = vsyncpa [#allocation6], 0
    // Predicated region
    $region2: #{tpu_custom_call.1} parent=1 // pred_check
      _
    $region3: #{tpu_custom_call.1} parent=1 // pred_check_branch
      %15 = sbr.rel (0) target = $region5
    $region4: #{tpu_custom_call.1} parent=1 // pred_region
      _
    $region5: #{tpu_custom_call.1} parent=1 // pred_fallthru
      _
    // Predicated region
    $region6: #{tpu_custom_call.1} parent=1 // pred_check
      _
    $region7: #{tpu_custom_call.1} parent=1 // pred_check_branch
      %17 = sbr.rel (0) target = $region9
    $region8: #{tpu_custom_call.1} parent=1 // pred_region
      _
    $region9: #{tpu_custom_call.1} parent=1 // pred_fallthru
      _
    // Predicated region
    $region10: #{tpu_custom_call.1} parent=1 // pred_check
      _
    $region11: #{tpu_custom_call.1} parent=1 // pred_check_branch
      %19 = sbr.rel (0) target = $region13
    $region12: #{tpu_custom_call.1} parent=1 // pred_region
      %s20 = sadd.s32 0, 0
      %p21 = scmp.lt.s32.totalorder %s20, 0
      %s22 = scalar_select %p21, %s20, 0
      %s23 = smul.u32 2, %s22
      %s25 = ssub.s32 256, 256
      %26 = vsyncadd [#allocation5], %s25
      %s27 = smul.addr %s23, 128
      %s28 = scalar_lea.hbm %s2, %s27
      %s29 = sshll.u32 [#allocation4], 4
      %s30 = int_to_ptr.vmem [resolvable:$true] %s29
      %35 = dma.hbm_to_vmem [thread:$0]  %s28, 256, %s30, [#allocation5], 128, 128, 8
    $region13: #{tpu_custom_call.1} parent=1 // pred_fallthru
      _
    // Predicated region
    $region14: #{tpu_custom_call.1} parent=1 // pred_check
      _
    $region15: #{tpu_custom_call.1} parent=1 // pred_check_branch
      %37 = sbr.rel (0) target = $region17
    $region16: #{tpu_custom_call.1} parent=1 // pred_region
      %s38 = sadd.s32 0, 0
      %p39 = scmp.lt.s32.totalorder %s38, 0
      %s40 = scalar_select %p39, %s38, 0
      %s41 = smul.u32 2, %s40
      %s43 = ssub.s32 256, 256
      %44 = vsyncadd [#allocation8], %s43
      %s45 = smul.addr %s41, 128
      %s46 = scalar_lea.hbm %s3, %s45
      %s47 = sshll.u32 [#allocation7], 4
      %s48 = int_to_ptr.vmem [resolvable:$true] %s47
      %53 = dma.hbm_to_vmem [thread:$0]  %s46, 256, %s48, [#allocation8], 128, 128, 8
    $region17: #{tpu_custom_call.1} parent=1 // pred_fallthru
      _
    // Predicated region
    $region18: #{tpu_custom_call.1} parent=1 // pred_check
      _
    $region19: #{tpu_custom_call.1} parent=1 // pred_check_branch
      %55 = sbr.rel (0) target = $region21
    $region20: #{tpu_custom_call.1} parent=1 // pred_region
      %56 = dma.done [#allocation5], 256
    $region21: #{tpu_custom_call.1} parent=1 // pred_fallthru
      _
    // Predicated region
    $region22: #{tpu_custom_call.1} parent=1 // pred_check
      _
    $region23: #{tpu_custom_call.1} parent=1 // pred_check_branch
      %58 = sbr.rel (0) target = $region25
    $region24: #{tpu_custom_call.1} parent=1 // pred_region
      %59 = dma.done [#allocation8], 256
    $region25: #{tpu_custom_call.1} parent=1 // pred_fallthru
      _
    %s60 = sadd.s32 0, 0
    %p61 = scmp.lt.s32.totalorder %s60, 0
    %s62 = scalar_select %p61, %s60, 0
    %s63 = smul.u32 2, %s62
    %s64 = sadd.s32 0, 0
    %p65 = scmp.lt.s32.totalorder %s64, 0
    %s66 = scalar_select %p65, %s64, 0
    %s67 = smul.u32 2, %s66
    %p68 = scmp.eq.s32.totalorder 0, 0
    // Predicated region
    $region26: #{tpu_custom_call.1} parent=1 // pred_check
      %p69 = pneg %p68
    $region27: #{tpu_custom_call.1} parent=1 // pred_check_branch
      %71 = sbr.rel (%p69) target = $region29
    $region28: #{tpu_custom_call.1} parent=1 // pred_region
      %72 = vst [vmem:[#allocation9] sm:$0xff] 0.0
    $region29: #{tpu_custom_call.1} parent=1 // pred_fallthru
      _
    %s73 = sadd.s32 0, 0
    %s74 = smul.u32 %s73, 16
    %s75 = sld [smem:[#allocation3]]
    %p76 = scmp.lt.s32.totalorder %s74, %s75
    // Predicated region
    $region30: #{tpu_custom_call.1} parent=1 // pred_check
      %p77 = pneg %p76
    $region31: #{tpu_custom_call.1} parent=1 // pred_check_branch
      %79 = sbr.rel (%p77) target = $region33
    $region32: #{tpu_custom_call.1} parent=1 // pred_region
      %v80 = vlaneseq
      %v81 = vshrl.u32 %v80, 7
      %v82 = vadd.s32 %v81, 8
      %v83 = vstv %s74
      %v84 = vadd.s32 %v83, %v81
      %v85 = vadd.s32 %v83, %v82
      %s86 = sld [smem:[#allocation3]]
      %v87 = vstv %s86
      %vm88 = vcmp.lt.s32.totalorder %v84, %v87
      %vm89 = vcmp.lt.s32.totalorder %v85, %v87
      %s90 = sld [smem:[#allocation2]]
      %v91 = vld [vmem:[#allocation4] sm:$0xff]
      %v92 = vld [vmem:[#allocation4 + $0x8] sm:$0xff]
      %v93 = vstv %s90
      %v94 = vmul.f32 %v91, %v93
      %v95 = vmul.f32 %v92, %v93
      %96 = vmax.xlane.f32.xlu0 %v94
      %v97 = vpop.xlane.xlu0 %96
      %98 = vmax.xlane.f32.xlu0 %v95
      %v99 = vpop.xlane.xlu0 %98
      %v100 = vsub.f32 %v94, %v97
      %v101 = vsub.f32 %v95, %v99
      %v102 = vmul.f32 %v100, 1.442695
      %v103 = vpow.pop %v102
      %v104 = vmul.f32 %v101, 1.442695
      %v105 = vpow.pop %v104
      %106 = vadd.xlane.f32.xlu0 %v103
      %v107 = vpop.xlane.xlu0 %106
      %108 = vadd.xlane.f32.xlu0 %v105
      %v109 = vpop.xlane.xlu0 %108
      %v110 = vlog2.pop %v107
      %v111 = vmul.f32 %v110, 0.6931472
      %v112 = vlog2.pop %v109
      %v113 = vmul.f32 %v112, 0.6931472
      %v114 = vadd.f32 %v111, %v97
      %v115 = vadd.f32 %v113, %v99
      %v116 = vsub.f32 %v94, %v114
      %v117 = vsub.f32 %v95, %v115
      %v118 = vld [vmem:[#allocation7] sm:$0xff]
      %v119 = vld [vmem:[#allocation7 + $0x8] sm:$0xff]
      %vm120 = vcmp.gt.f32.partialorder %v118, 0.0
      %vm121 = vcmp.gt.f32.partialorder %v119, 0.0
      %v122 = vsel %vm88, 1, 0
      %v123 = vsel %vm89, 1, 0
      %vm124 = vcmp.eq.s32.totalorder %v122, 1
      %vm125 = vcmp.eq.s32.totalorder %v123, 1
      %vm126 = vmand %vm120, %vm124
      %vm127 = vmand %vm121, %vm125
      %v128 = vsel %vm126, %v118, 1.0
      %v129 = vsel %vm127, %v119, 1.0
      %v130 = vlog2.pop %v128
      %v131 = vmul.f32 %v130, 0.6931472
      %v132 = vlog2.pop %v129
      %v133 = vmul.f32 %v132, 0.6931472
      %v134 = vsub.f32 %v131, %v116
      %v135 = vsub.f32 %v133, %v117
      %v136 = vmul.f32 %v118, %v134
      %v137 = vmul.f32 %v119, %v135
      %v138 = vsel %vm126, %v136, 0.0
      %v139 = vsel %vm127, %v137, 0.0
      %v140 = vadd.f32 %v138, %v139
      %v141 = vld [vmem:[#allocation9] sm:$0xff]
      %v142 = vadd.f32 %v141, %v140
      %143 = vst [vmem:[#allocation9] sm:$0xff] %v142
    $region33: #{tpu_custom_call.1} parent=1 // pred_fallthru
      _
    // Predicated region
    $region34: #{tpu_custom_call.1} parent=1 // pred_check
      _
    $region35: #{tpu_custom_call.1} parent=1 // pred_check_branch
      %145 = sbr.rel (0) target = $region37
    $region36: #{tpu_custom_call.1} parent=1 // pred_region
      %s147 = ssub.s32 128, 128
      %148 = vsyncadd [#allocation6], %s147
      %s150 = sshll.u32 [#allocation9], 4
      %s151 = int_to_ptr.vmem [resolvable:$true] %s150
      %153 = dma.vmem_to_hbm [thread:$0]  %s151, 128, %s4, [#allocation6]
    $region37: #{tpu_custom_call.1} parent=1 // pred_fallthru
      _
    // Predicated region
    $region38: #{tpu_custom_call.1} parent=1 // pred_check
      _
    $region39: #{tpu_custom_call.1} parent=1 // pred_check_branch
      %155 = sbr.rel (0) target = $region41
    $region40: #{tpu_custom_call.1} parent=1 // pred_region
      %156 = dma.done [#allocation6], 128
    $region41: #{tpu_custom_call.1} parent=1 // pred_fallthru
      _
    %157 = vsyncpa [#allocation5], 1
    %158 = vsyncpa [#allocation8], 1
    %159 = vsyncpa [#allocation6], 1

</llo_original>
